<compile_context>
chip_gen: v7x
topology: tpu7x:2x2x1
jax: 0.10.0
libtpu: 0.0.40
codegen_flags: <defaults>
</compile_context>

<pallas_src>
import jax
import jax.numpy as jnp
from jax.experimental import pallas as pl
from jax.experimental.pallas import tpu as pltpu

_EPS = 1e-5
_SLOPE = 0.2


def _leaky_relu(x):
    return jnp.where(x > 0, x, _SLOPE * x)


def critic_kernel(x_ref, w1_ref, w2_ref, p_ref, o_ref):
    """Whole-forward kernel; everything resident in VMEM as single blocks.

    p_ref: (8, 2H) packed params:
      row 0: gamma1 in [:H]      row 1: beta1 in [:H]
      row 2: gamma2 (2H)         row 3: beta2 (2H)
      row 4: w3 row  (2H)        row 5, col 0: b3
    """
    H = w1_ref.shape[1]
    x = x_ref[...].astype(jnp.float32)
    p = p_ref[...]

    # ---- block 1: Linear (bias dropped, no-op pre-BN) -> BN -> LeakyReLU ----
    h1 = jnp.dot(x, w1_ref[...], preferred_element_type=jnp.float32)
    mu1 = jnp.mean(h1, axis=0, keepdims=True)
    var1 = jnp.mean((h1 - mu1) * (h1 - mu1), axis=0, keepdims=True)  # biased var
    scale1 = p[0:1, :H] * jax.lax.rsqrt(var1 + _EPS)
    shift1 = p[1:2, :H] - mu1 * scale1
    h1 = _leaky_relu(h1 * scale1 + shift1)

    # ---- block 2: Linear (bias dropped) -> BN -> LeakyReLU ----
    h2 = jnp.dot(h1, w2_ref[...], preferred_element_type=jnp.float32)
    mu2 = jnp.mean(h2, axis=0, keepdims=True)
    var2 = jnp.mean((h2 - mu2) * (h2 - mu2), axis=0, keepdims=True)
    scale2 = p[2:3, :] * jax.lax.rsqrt(var2 + _EPS)
    shift2 = p[3:4, :] - mu2 * scale2
    h2 = _leaky_relu(h2 * scale2 + shift2)

    # ---- final block: Linear to 1 feature as VPU mul + lane reduction ----
    y = jnp.sum(h2 * p[4:5, :], axis=-1, keepdims=True) + p[5:6, 0:1]
    o_ref[...] = y.astype(o_ref.dtype)


def init_critic_params(key, in_features_len, hidden_dim):
    """Deterministic params, shapes matching the PyTorch module.

    Linear weights stored as (in, out) = transpose of nn.Linear's (out, in),
    initialized uniform(-1/sqrt(in), 1/sqrt(in)) like PyTorch's default.
    BatchNorm: gamma=1, beta=0.
    """
    dims = [(in_features_len, hidden_dim),
            (hidden_dim, hidden_dim * 2),
            (hidden_dim * 2, 1)]
    keys = jax.random.split(key, 2 * len(dims))
    params = []
    for i, (fan_in, fan_out) in enumerate(dims):
        bound = 1.0 / jnp.sqrt(jnp.float32(fan_in))
        w = jax.random.uniform(keys[2 * i], (fan_in, fan_out),
                               jnp.float32, -bound, bound)
        b = jax.random.uniform(keys[2 * i + 1], (1, fan_out),
                               jnp.float32, -bound, bound)
        params.append((w, b))
    (w1, b1), (w2, b2), (w3, b3) = params
    g1 = jnp.ones((1, hidden_dim), jnp.float32)
    be1 = jnp.zeros((1, hidden_dim), jnp.float32)
    g2 = jnp.ones((1, hidden_dim * 2), jnp.float32)
    be2 = jnp.zeros((1, hidden_dim * 2), jnp.float32)
    return (w1, b1, g1, be1, w2, b2, g2, be2, w3, b3)


def pack_critic_params(params):
    """Coalesce small per-feature vectors into one (8, 2H) array (one tile)."""
    w1, _b1, g1, be1, w2, _b2, g2, be2, w3, b3 = params
    H = w1.shape[1]
    H2 = w2.shape[1]
    packed = jnp.zeros((8, H2), jnp.float32)
    packed = packed.at[0, :H].set(g1.reshape(-1))
    packed = packed.at[1, :H].set(be1.reshape(-1))
    packed = packed.at[2, :].set(g2.reshape(-1))
    packed = packed.at[3, :].set(be2.reshape(-1))
    packed = packed.at[4, :].set(w3.reshape(-1))
    packed = packed.at[5, 0].set(b3.reshape(-1)[0])
    return w1, w2, packed


def critic_forward(x, params):
    """x: (B, in_features_len) float32 -> (B, 1) float32."""
    w1, w2, packed = pack_critic_params(params)
    B = x.shape[0]
    vmem_spec = pl.BlockSpec(memory_space=pltpu.MemorySpace.VMEM)
    return pl.pallas_call(
        critic_kernel,
        out_shape=jax.ShapeDtypeStruct((B, 1), jnp.float32),
        in_specs=[vmem_spec] * 4,
        out_specs=vmem_spec,
    )(x, w1, w2, packed)


def critic_reference(x, params):
    """Pure-JAX reference matching the full PyTorch math (biases included)."""
    w1, b1, g1, be1, w2, b2, g2, be2, w3, b3 = params

    def bn_lrelu(h, g, be):
        mu = jnp.mean(h, axis=0, keepdims=True)
        var = jnp.mean((h - mu) ** 2, axis=0, keepdims=True)
        h = g * (h - mu) / jnp.sqrt(var + _EPS) + be
        return jnp.where(h > 0, h, _SLOPE * h)

    h1 = bn_lrelu(x @ w1 + b1, g1, be1)
    h2 = bn_lrelu(h1 @ w2 + b2, g2, be2)
    return h2 @ w3 + b3


if __name__ == "__main__":
    in_features_len = 4
    hidden_dim = 32
    batch = 8

    key = jax.random.PRNGKey(0)
    k_x, k_p = jax.random.split(key)
    x = jax.random.normal(k_x, (batch, in_features_len), jnp.float32)
    params = init_critic_params(k_p, in_features_len, hidden_dim)

    out = critic_forward(x, params)
    out = jax.block_until_ready(out)

    ref = critic_reference(x, params)
    assert out.shape == (batch, 1), out.shape
    assert jnp.allclose(out, ref, atol=1e-4, rtol=1e-4), (out, ref)

    print("KERNEL_OK")
</pallas_src>

<mosaic_0001>
module attributes {stable_mosaic.version = 11 : i64} {
  func.func @critic_kernel(%arg0: memref<8x4xf32, #tpu.memory_space<vmem>>, %arg1: memref<4x32xf32, #tpu.memory_space<vmem>>, %arg2: memref<32x64xf32, #tpu.memory_space<vmem>>, %arg3: memref<8x64xf32, #tpu.memory_space<vmem>>, %arg4: memref<8x1xf32, #tpu.memory_space<vmem>>) attributes {dimension_semantics = [], scalar_prefetch = 0 : i64, scratch_operands = 0 : i64, tpu.core_type = #tpu.core_type<tc>} {
    %c0 = arith.constant 0 : index
    %c0_0 = arith.constant 0 : index
    %0 = vector.load %arg0[%c0, %c0_0] : memref<8x4xf32, #tpu.memory_space<vmem>>, vector<8x4xf32>
    %c0_1 = arith.constant 0 : index
    %c0_2 = arith.constant 0 : index
    %1 = vector.load %arg3[%c0_1, %c0_2] : memref<8x64xf32, #tpu.memory_space<vmem>>, vector<8x64xf32>
    %c0_3 = arith.constant 0 : index
    %c0_4 = arith.constant 0 : index
    %2 = vector.load %arg1[%c0_3, %c0_4] : memref<4x32xf32, #tpu.memory_space<vmem>>, vector<4x32xf32>
    %cst = arith.constant dense<0.000000e+00> : vector<8x32xf32>
    %3 = tpu.matmul %0, %2, %cst {dimension_numbers = #tpu.dot_dimension_numbers<[1], [0], [0], [1], [0, 0, 1, 1], [], []>} : vector<8x4xf32>, vector<4x32xf32>, vector<8x32xf32> -> vector<8x32xf32>
    %cst_5 = arith.constant dense<0.000000e+00> : vector<32xf32>
    %4 = vector.multi_reduction <add>, %3, %cst_5 [0] : vector<8x32xf32> to vector<32xf32>
    %5 = vector.shape_cast %4 : vector<32xf32> to vector<1x32xf32>
    %cst_6 = arith.constant 8.000000e+00 : f32
    %6 = vector.broadcast %cst_6 : f32 to vector<1x32xf32>
    %7 = arith.divf %5, %6 : vector<1x32xf32>
    %8 = vector.broadcast %7 : vector<1x32xf32> to vector<8x32xf32>
    %9 = arith.subf %3, %8 : vector<8x32xf32>
    %10 = vector.broadcast %7 : vector<1x32xf32> to vector<8x32xf32>
    %11 = arith.subf %3, %10 : vector<8x32xf32>
    %12 = arith.mulf %9, %11 : vector<8x32xf32>
    %cst_7 = arith.constant dense<0.000000e+00> : vector<32xf32>
    %13 = vector.multi_reduction <add>, %12, %cst_7 [0] : vector<8x32xf32> to vector<32xf32>
    %14 = vector.shape_cast %13 : vector<32xf32> to vector<1x32xf32>
    %cst_8 = arith.constant 8.000000e+00 : f32
    %15 = vector.broadcast %cst_8 : f32 to vector<1x32xf32>
    %16 = arith.divf %14, %15 : vector<1x32xf32>
    %17 = vector.extract_strided_slice %1 {offsets = [0, 0], sizes = [1, 32], strides = [1, 1]} : vector<8x64xf32> to vector<1x32xf32>
    %cst_9 = arith.constant 9.99999974E-6 : f32
    %18 = vector.broadcast %cst_9 : f32 to vector<1x32xf32>
    %19 = arith.addf %16, %18 : vector<1x32xf32>
    %20 = math.rsqrt %19 : vector<1x32xf32>
    %21 = arith.mulf %17, %20 : vector<1x32xf32>
    %22 = vector.extract_strided_slice %1 {offsets = [1, 0], sizes = [1, 32], strides = [1, 1]} : vector<8x64xf32> to vector<1x32xf32>
    %23 = arith.mulf %7, %21 : vector<1x32xf32>
    %24 = arith.subf %22, %23 : vector<1x32xf32>
    %25 = vector.broadcast %21 : vector<1x32xf32> to vector<8x32xf32>
    %26 = arith.mulf %3, %25 : vector<8x32xf32>
    %27 = vector.broadcast %24 : vector<1x32xf32> to vector<8x32xf32>
    %28 = arith.addf %26, %27 : vector<8x32xf32>
    %cst_10 = arith.constant 0.000000e+00 : f32
    %29 = vector.broadcast %cst_10 : f32 to vector<8x32xf32>
    %30 = arith.cmpf ogt, %28, %29 : vector<8x32xf32>
    %cst_11 = arith.constant 2.000000e-01 : f32
    %31 = vector.broadcast %cst_11 : f32 to vector<8x32xf32>
    %32 = arith.mulf %31, %28 : vector<8x32xf32>
    %33 = arith.select %30, %28, %32 : vector<8x32xi1>, vector<8x32xf32>
    %c0_12 = arith.constant 0 : index
    %c0_13 = arith.constant 0 : index
    %34 = vector.load %arg2[%c0_12, %c0_13] : memref<32x64xf32, #tpu.memory_space<vmem>>, vector<32x64xf32>
    %cst_14 = arith.constant dense<0.000000e+00> : vector<8x64xf32>
    %35 = tpu.matmul %33, %34, %cst_14 {dimension_numbers = #tpu.dot_dimension_numbers<[1], [0], [0], [1], [0, 0, 1, 1], [], []>} : vector<8x32xf32>, vector<32x64xf32>, vector<8x64xf32> -> vector<8x64xf32>
    %cst_15 = arith.constant dense<0.000000e+00> : vector<64xf32>
    %36 = vector.multi_reduction <add>, %35, %cst_15 [0] : vector<8x64xf32> to vector<64xf32>
    %37 = vector.shape_cast %36 : vector<64xf32> to vector<1x64xf32>
    %cst_16 = arith.constant 8.000000e+00 : f32
    %38 = vector.broadcast %cst_16 : f32 to vector<1x64xf32>
    %39 = arith.divf %37, %38 : vector<1x64xf32>
    %40 = vector.broadcast %39 : vector<1x64xf32> to vector<8x64xf32>
    %41 = arith.subf %35, %40 : vector<8x64xf32>
    %42 = vector.broadcast %39 : vector<1x64xf32> to vector<8x64xf32>
    %43 = arith.subf %35, %42 : vector<8x64xf32>
    %44 = arith.mulf %41, %43 : vector<8x64xf32>
    %cst_17 = arith.constant dense<0.000000e+00> : vector<64xf32>
    %45 = vector.multi_reduction <add>, %44, %cst_17 [0] : vector<8x64xf32> to vector<64xf32>
    %46 = vector.shape_cast %45 : vector<64xf32> to vector<1x64xf32>
    %cst_18 = arith.constant 8.000000e+00 : f32
    %47 = vector.broadcast %cst_18 : f32 to vector<1x64xf32>
    %48 = arith.divf %46, %47 : vector<1x64xf32>
    %49 = vector.extract_strided_slice %1 {offsets = [2, 0], sizes = [1, 64], strides = [1, 1]} : vector<8x64xf32> to vector<1x64xf32>
    %cst_19 = arith.constant 9.99999974E-6 : f32
    %50 = vector.broadcast %cst_19 : f32 to vector<1x64xf32>
    %51 = arith.addf %48, %50 : vector<1x64xf32>
    %52 = math.rsqrt %51 : vector<1x64xf32>
    %53 = arith.mulf %49, %52 : vector<1x64xf32>
    %54 = vector.extract_strided_slice %1 {offsets = [3, 0], sizes = [1, 64], strides = [1, 1]} : vector<8x64xf32> to vector<1x64xf32>
    %55 = arith.mulf %39, %53 : vector<1x64xf32>
    %56 = arith.subf %54, %55 : vector<1x64xf32>
    %57 = vector.broadcast %53 : vector<1x64xf32> to vector<8x64xf32>
    %58 = arith.mulf %35, %57 : vector<8x64xf32>
    %59 = vector.broadcast %56 : vector<1x64xf32> to vector<8x64xf32>
    %60 = arith.addf %58, %59 : vector<8x64xf32>
    %cst_20 = arith.constant 0.000000e+00 : f32
    %61 = vector.broadcast %cst_20 : f32 to vector<8x64xf32>
    %62 = arith.cmpf ogt, %60, %61 : vector<8x64xf32>
    %cst_21 = arith.constant 2.000000e-01 : f32
    %63 = vector.broadcast %cst_21 : f32 to vector<8x64xf32>
    %64 = arith.mulf %63, %60 : vector<8x64xf32>
    %65 = arith.select %62, %60, %64 : vector<8x64xi1>, vector<8x64xf32>
    %66 = vector.extract_strided_slice %1 {offsets = [4, 0], sizes = [1, 64], strides = [1, 1]} : vector<8x64xf32> to vector<1x64xf32>
    %67 = vector.broadcast %66 : vector<1x64xf32> to vector<8x64xf32>
    %68 = arith.mulf %65, %67 : vector<8x64xf32>
    %cst_22 = arith.constant dense<0.000000e+00> : vector<8xf32>
    %69 = vector.multi_reduction <add>, %68, %cst_22 [1] : vector<8x64xf32> to vector<8xf32>
    %70 = vector.shape_cast %69 : vector<8xf32> to vector<8x1xf32>
    %71 = vector.extract_strided_slice %1 {offsets = [5, 0], sizes = [1, 1], strides = [1, 1]} : vector<8x64xf32> to vector<1x1xf32>
    %72 = vector.broadcast %71 : vector<1x1xf32> to vector<8x1xf32>
    %73 = arith.addf %70, %72 : vector<8x1xf32>
    %c0_23 = arith.constant 0 : index
    %c0_24 = arith.constant 0 : index
    %74 = vector.load %arg4[%c0_23, %c0_24] : memref<8x1xf32, #tpu.memory_space<vmem>>, vector<8x1xf32>
    tpu.vector_store %arg4[%c0_23, %c0_24], %73 {strides = array<i32>} : memref<8x1xf32, #tpu.memory_space<vmem>>, vector<8x1xf32>,
    return
  }
}

</mosaic_0001>

<llo_original>
// kernel: tpu_custom_call.1
$region0: #{tpu_custom_call.1}
  #allocation0 [shape = 'u32[]', space=smem, size = 0x4, offset = 0x4, fixed_abs, tag = 'smem constant byte address 0x4 - core index']
  #allocation1 [shape = 'u32[144,128]{1,0:T(1,128)}', space=vmem, size = 0x12000, scoped, tag = 'internal scratch']
  %s0 = inlined_call_operand.vmem [shape: f32[8,4], index: 0, kind: input, shape index: {}]
  %s1 = inlined_call_operand.vmem [shape: f32[4,32], index: 1, kind: input, shape index: {}]
  %s2 = inlined_call_operand.hbm [shape: f32[32,64], index: 2, kind: input, shape index: {}]
  %s3 = inlined_call_operand.vmem [shape: f32[8,64], index: 3, kind: input, shape index: {}]
  %s4 = inlined_call_operand.vmem [shape: f32[8,1], index: 4, kind: output, shape index: {}]
  %s5 = sld [smem:[#allocation0]]
  $region30: #{tpu_custom_call.1} parent=0
    _
  %s7 = ssub.s32 1, %s5
  %s8 = scalar_select 0, %s7, %s5
  $region1: #{tpu_custom_call.1} parent=0
    #allocation2 [shape = 'u8[16384]{0}', space=vmem, size = 0x4000, scoped, tag = 'input window, operand 2, single buffered']
    #allocation3 [shape = 's32[1]{0}', space=sflag, size = 0x4, scoped, tag = 'scoped memory for tpu_custom_call.1']
    %9 = vsyncpa [#allocation3], 0
    // Predicated region
    $region2: #{tpu_custom_call.1} parent=1 // pred_check
      _
    $region3: #{tpu_custom_call.1} parent=1 // pred_check_branch
      %11 = sbr.rel (0) target = $region5
    $region4: #{tpu_custom_call.1} parent=1 // pred_region
      _
    $region5: #{tpu_custom_call.1} parent=1 // pred_fallthru
      _
    // Predicated region
    $region6: #{tpu_custom_call.1} parent=1 // pred_check
      _
    $region7: #{tpu_custom_call.1} parent=1 // pred_check_branch
      %13 = sbr.rel (0) target = $region9
    $region8: #{tpu_custom_call.1} parent=1 // pred_region
      _
    $region9: #{tpu_custom_call.1} parent=1 // pred_fallthru
      _
    // Predicated region
    $region10: #{tpu_custom_call.1} parent=1 // pred_check
      _
    $region11: #{tpu_custom_call.1} parent=1 // pred_check_branch
      %15 = sbr.rel (0) target = $region13
    $region12: #{tpu_custom_call.1} parent=1 // pred_region
      %s17 = ssub.s32 512, 512
      %18 = vsyncadd [#allocation3], %s17
      %s19 = sshll.u32 [#allocation2], 4
      %s20 = int_to_ptr.vmem [resolvable:$true] %s19
      %25 = dma.hbm_to_vmem [thread:$0]  %s2, 512, %s20, [#allocation3], 128, 128, 8
    $region13: #{tpu_custom_call.1} parent=1 // pred_fallthru
      _
    // Predicated region
    $region14: #{tpu_custom_call.1} parent=1 // pred_check
      _
    $region15: #{tpu_custom_call.1} parent=1 // pred_check_branch
      %27 = sbr.rel (0) target = $region17
    $region16: #{tpu_custom_call.1} parent=1 // pred_region
      _
    $region17: #{tpu_custom_call.1} parent=1 // pred_fallthru
      _
    // Predicated region
    $region18: #{tpu_custom_call.1} parent=1 // pred_check
      _
    $region19: #{tpu_custom_call.1} parent=1 // pred_check_branch
      %29 = sbr.rel (0) target = $region21
    $region20: #{tpu_custom_call.1} parent=1 // pred_region
      %30 = dma.done [#allocation3], 512
    $region21: #{tpu_custom_call.1} parent=1 // pred_fallthru
      _
    %v31 = vld [vmem:[%s0] sm:$0xff]
    %v32 = vld [vmem:[%s3] sm:$0xff]
    %v33 = vld [vmem:[%s1] sm:$0xf]
    %vm34 = vcmask 31744
    %v36 = vsel %vm34, %v31, 0
    %vm38 = vcmask 1043456
    %v40 = vsel %vm38, %v33, 0
    %42 = vmatprep.subr.mxu0 0.0
    %43 = vmatpush1.msra.mxu0 %v40
    %44 = vmatprep.subr.mxu0 0.0
    %45 = vmatpush1.msra.mxu0 0.0
    %46 = vmatprep.subr.mxu0 0.0
    %47 = vmatpush1.msra.mxu0 0.0
    %48 = vmatprep.subr.mxu0 0.0
    %49 = vmatpush1.msra.mxu0 0.0
    %50 = vmatprep.subr.mxu0 0.0
    %51 = vmatpush1.msra.mxu0 0.0
    %52 = vmatprep.subr.mxu0 0.0
    %53 = vmatpush1.msra.mxu0 0.0
    %54 = vmatprep.subr.mxu0 0.0
    %55 = vmatpush1.msra.mxu0 0.0
    %56 = vmatprep.subr.mxu0 0.0
    %57 = vmatpush1.msra.mxu0 0.0
    %58 = vmatprep.subr.mxu0 0.0
    %59 = vmatpush1.msra.mxu0 0.0
    %60 = vmatprep.subr.mxu0 0.0
    %61 = vmatpush1.msra.mxu0 0.0
    %62 = vmatprep.subr.mxu0 0.0
    %63 = vmatpush1.msra.mxu0 0.0
    %64 = vmatprep.subr.mxu0 0.0
    %65 = vmatpush1.msra.mxu0 0.0
    %66 = vmatprep.subr.mxu0 0.0
    %67 = vmatpush1.msra.mxu0 0.0
    %68 = vmatprep.subr.mxu0 0.0
    %69 = vmatpush1.msra.mxu0 0.0
    %70 = vmatprep.subr.mxu0 0.0
    %71 = vmatpush1.msra.mxu0 0.0
    %72 = vmatprep.subr.mxu0 0.0
    %73 = vmatpush1.msra.mxu0 0.0
    %74 = vmatprep.subr.mxu0 0.0
    %75 = vmatpush1.msra.mxu0 0.0
    %76 = vmatprep.subr.mxu0 0.0
    %77 = vmatpush1.msra.mxu0 0.0
    %78 = vmatprep.subr.mxu0 0.0
    %79 = vmatpush1.msra.mxu0 0.0
    %80 = vmatprep.subr.mxu0 0.0
    %81 = vmatpush1.msra.mxu0 0.0
    %82 = vmatprep.subr.mxu0 0.0
    %83 = vmatpush1.msra.mxu0 0.0
    %84 = vmatprep.subr.mxu0 0.0
    %85 = vmatpush1.msra.mxu0 0.0
    %86 = vmatprep.subr.mxu0 0.0
    %87 = vmatpush1.msra.mxu0 0.0
    %88 = vmatprep.subr.mxu0 0.0
    %89 = vmatpush1.msra.mxu0 0.0
    %90 = vmatprep.subr.mxu0 0.0
    %91 = vmatpush1.msra.mxu0 0.0
    %92 = vmatprep.subr.mxu0 0.0
    %93 = vmatpush1.msra.mxu0 0.0
    %94 = vmatprep.subr.mxu0 0.0
    %95 = vmatpush1.msra.mxu0 0.0
    %96 = vmatprep.subr.mxu0 0.0
    %97 = vmatpush1.msra.mxu0 0.0
    %98 = vmatprep.subr.mxu0 0.0
    %99 = vmatpush1.msra.mxu0 0.0
    %100 = vmatprep.subr.mxu0 0.0
    %101 = vmatpush1.msra.mxu0 0.0
    %102 = vmatprep.subr.mxu0 0.0
    %103 = vmatpush1.msra.mxu0 0.0
    %104 = vmatprep.subr.mxu0 0.0
    %105 = vmatpush1.msra.mxu0 0.0
    %106 = vmatprep.mubr.f32.mxu0 0.0
    %107 = vmatmul.mubr.f32.gmra.mrb[0].mxu0 %v36
    %v108 = vpop.f32.mrb[0].mxu0
    %v109 = vadd.f32 0.0, %v108
    %v110 = vpop.f32.mrb[0].mxu0
    %111 = vdwg.mxu0
    %vm112 = vcmask 261120
    %v113 = vsel %vm112, %v109, 0.0
    %v114 = vrot.slane %v113, 4
    %v115 = vadd.f32 %v113, %v114
    %v116 = vrot.slane %v115, 2
    %v117 = vadd.f32 %v115, %v116
    %v118 = vrot.slane %v117, 1
    %v119 = vadd.f32 %v117, %v118
    %v120 = vrcp.pop 8.0
    %v121 = vmul.f32 %v119, %v120
    %v122 = vsub.f32 %v109, %v121
    %v123 = vmul.f32 %v122, %v122
    %v124 = vsel %vm112, %v123, 0.0
    %v125 = vrot.slane %v124, 4
    %v126 = vadd.f32 %v124, %v125
    %v127 = vrot.slane %v126, 2
    %v128 = vadd.f32 %v126, %v127
    %v129 = vrot.slane %v128, 1
    %v130 = vadd.f32 %v128, %v129
    %v131 = vmul.f32 %v130, %v120
    %v132 = vadd.f32 %v131, 1e-05
    %v133 = vrsqrt.pop %v132
    %v134 = vmul.f32 %v32, %v133
    %v135 = vmul.f32 %v121, %v134
    %v137 = vrot.slane %v135, 7
    %v139 = vsub.f32 %v32, %v137
    %v140 = vlaneseq
    %v141 = vshrl.u32 %v140, 7
    %v142 = vsub.s32 0, %v141
    %v143 = vrot.slane %v134, %v142
    %v144 = vmul.f32 %v109, %v143
    %v145 = vlaneseq
    %v146 = vshrl.u32 %v145, 7
    %v147 = vsub.s32 1, %v146
    %v148 = vrot.slane %v139, %v147
    %v149 = vadd.f32 %v144, %v148
    %vm150 = vcmp.gt.f32.partialorder %v149, 0.0
    %v151 = vmul.f32 %v149, 0.2
    %v152 = vsel %vm150, %v149, %v151
    %v153 = vld [vmem:[#allocation2] sm:$0xff]
    %v154 = vld [vmem:[#allocation2 + $0x8] sm:$0xff]
    %v155 = vld [vmem:[#allocation2 + $0x10] sm:$0xff]
    %v156 = vld [vmem:[#allocation2 + $0x18] sm:$0xff]
    %v158 = vsel %vm112, %v152, 0
    %160 = vmatprep.subr.mxu0 0.0
    %161 = vmatpush1.msra.mxu0 %v153
    %162 = vmatprep.subr.mxu0 0.0
    %163 = vmatpush1.msra.mxu0 %v154
    %164 = vmatprep.subr.mxu0 0.0
    %165 = vmatpush1.msra.mxu0 %v155
    %166 = vmatprep.subr.mxu0 0.0
    %167 = vmatpush1.msra.mxu0 %v156
    %168 = vmatprep.subr.mxu0 0.0
    %169 = vmatpush1.msra.mxu0 0.0
    %170 = vmatprep.subr.mxu0 0.0
    %171 = vmatpush1.msra.mxu0 0.0
    %172 = vmatprep.subr.mxu0 0.0
    %173 = vmatpush1.msra.mxu0 0.0
    %174 = vmatprep.subr.mxu0 0.0
    %175 = vmatpush1.msra.mxu0 0.0
    %176 = vmatprep.subr.mxu0 0.0
    %177 = vmatpush1.msra.mxu0 0.0
    %178 = vmatprep.subr.mxu0 0.0
    %179 = vmatpush1.msra.mxu0 0.0
    %180 = vmatprep.subr.mxu0 0.0
    %181 = vmatpush1.msra.mxu0 0.0
    %182 = vmatprep.subr.mxu0 0.0
    %183 = vmatpush1.msra.mxu0 0.0
    %184 = vmatprep.subr.mxu0 0.0
    %185 = vmatpush1.msra.mxu0 0.0
    %186 = vmatprep.subr.mxu0 0.0
    %187 = vmatpush1.msra.mxu0 0.0
    %188 = vmatprep.subr.mxu0 0.0
    %189 = vmatpush1.msra.mxu0 0.0
    %190 = vmatprep.subr.mxu0 0.0
    %191 = vmatpush1.msra.mxu0 0.0
    %192 = vmatprep.subr.mxu0 0.0
    %193 = vmatpush1.msra.mxu0 0.0
    %194 = vmatprep.subr.mxu0 0.0
    %195 = vmatpush1.msra.mxu0 0.0
    %196 = vmatprep.subr.mxu0 0.0
    %197 = vmatpush1.msra.mxu0 0.0
    %198 = vmatprep.subr.mxu0 0.0
    %199 = vmatpush1.msra.mxu0 0.0
    %200 = vmatprep.subr.mxu0 0.0
    %201 = vmatpush1.msra.mxu0 0.0
    %202 = vmatprep.subr.mxu0 0.0
    %203 = vmatpush1.msra.mxu0 0.0
    %204 = vmatprep.subr.mxu0 0.0
    %205 = vmatpush1.msra.mxu0 0.0
    %206 = vmatprep.subr.mxu0 0.0
    %207 = vmatpush1.msra.mxu0 0.0
    %208 = vmatprep.subr.mxu0 0.0
    %209 = vmatpush1.msra.mxu0 0.0
    %210 = vmatprep.subr.mxu0 0.0
    %211 = vmatpush1.msra.mxu0 0.0
    %212 = vmatprep.subr.mxu0 0.0
    %213 = vmatpush1.msra.mxu0 0.0
    %214 = vmatprep.subr.mxu0 0.0
    %215 = vmatpush1.msra.mxu0 0.0
    %216 = vmatprep.subr.mxu0 0.0
    %217 = vmatpush1.msra.mxu0 0.0
    %218 = vmatprep.subr.mxu0 0.0
    %219 = vmatpush1.msra.mxu0 0.0
    %220 = vmatprep.subr.mxu0 0.0
    %221 = vmatpush1.msra.mxu0 0.0
    %222 = vmatprep.subr.mxu0 0.0
    %223 = vmatpush1.msra.mxu0 0.0
    %224 = vmatprep.mubr.f32.mxu0 0.0
    %225 = vmatmul.mubr.f32.gmra.mrb[0].mxu0 %v158
    %v226 = vpop.f32.mrb[0].mxu0
    %v227 = vadd.f32 0.0, %v226
    %v228 = vpop.f32.mrb[0].mxu0
    %229 = vdwg.mxu0
    %vm230 = vcmask 523264
    %v231 = vsel %vm230, %v227, 0.0
    %v232 = vrot.slane %v231, 4
    %v233 = vadd.f32 %v231, %v232
    %v234 = vrot.slane %v233, 2
    %v235 = vadd.f32 %v233, %v234
    %v236 = vrot.slane %v235, 1
    %v237 = vadd.f32 %v235, %v236
    %v238 = vmul.f32 %v237, %v120
    %v239 = vsub.f32 %v227, %v238
    %v240 = vmul.f32 %v239, %v239
    %v241 = vsel %vm230, %v240, 0.0
    %v242 = vrot.slane %v241, 4
    %v243 = vadd.f32 %v241, %v242
    %v244 = vrot.slane %v243, 2
    %v245 = vadd.f32 %v243, %v244
    %v246 = vrot.slane %v245, 1
    %v247 = vadd.f32 %v245, %v246
    %v248 = vmul.f32 %v247, %v120
    %v249 = vadd.f32 %v248, 1e-05
    %v250 = vrsqrt.pop %v249
    %v251 = vmul.f32 %v32, %v250
    %v252 = vmul.f32 %v238, %v251
    %v254 = vrot.slane %v252, 7
    %v256 = vsub.f32 %v32, %v254
    %v257 = vlaneseq
    %v258 = vshrl.u32 %v257, 7
    %v259 = vsub.s32 2, %v258
    %v260 = vrot.slane %v251, %v259
    %v261 = vmul.f32 %v227, %v260
    %v262 = vlaneseq
    %v263 = vshrl.u32 %v262, 7
    %v264 = vsub.s32 3, %v263
    %v265 = vrot.slane %v256, %v264
    %v266 = vadd.f32 %v261, %v265
    %vm267 = vcmp.gt.f32.partialorder %v266, 0.0
    %v268 = vmul.f32 %v266, 0.2
    %v269 = vsel %vm267, %v266, %v268
    %v270 = vlaneseq
    %v271 = vshrl.u32 %v270, 7
    %v272 = vsub.s32 4, %v271
    %v273 = vrot.slane %v32, %v272
    %v274 = vmul.f32 %v269, %v273
    %v275 = vsel %vm230, %v274, 0.0
    %276 = vadd.xlane.f32.xlu0 %v275
    %v277 = vpop.xlane.xlu0 %276
    %v278 = vlaneseq
    %v279 = vshrl.u32 %v278, 7
    %v280 = vsub.s32 5, %v279
    %v281 = vrot.slane %v32, %v280
    %v282 = vadd.f32 %v277, %v281
    %vm283 = vcmask 7168
    %284 = vst.msk [vmem:[%s4] sm:$0xff] %vm283, %v282
    // Predicated region
    $region22: #{tpu_custom_call.1} parent=1 // pred_check
      _
    $region23: #{tpu_custom_call.1} parent=1 // pred_check_branch
      %286 = sbr.rel (0) target = $region25
    $region24: #{tpu_custom_call.1} parent=1 // pred_region
      _
    $region25: #{tpu_custom_call.1} parent=1 // pred_fallthru
      _
    // Predicated region
    $region26: #{tpu_custom_call.1} parent=1 // pred_check
      _
    $region27: #{tpu_custom_call.1} parent=1 // pred_check_branch
      %288 = sbr.rel (0) target = $region29
    $region28: #{tpu_custom_call.1} parent=1 // pred_region
      _
    $region29: #{tpu_custom_call.1} parent=1 // pred_fallthru
      _
    %289 = vsyncpa [#allocation3], 1

</llo_original>
